<compile_context>
chip_gen: v6e
topology: v6e:2x2x1
jax: 0.10.0
libtpu: 0.0.40
codegen_flags: <defaults>
</compile_context>

<pallas_src>
import functools

import jax
import jax.numpy as jnp
from jax.experimental import pallas as pl
from jax.experimental.pallas import tpu as pltpu

ALPHA = 0.2          # LeakyReLU negative slope (fixed in the torch module)
NEG_INF = -9e15      # masking constant (matches the torch code exactly)


def _op_attn_kernel(h_ref, mask_ref, w_ref, bcast_ref, out_ref, *, apply_elu: bool):
    """TB batch elements per step; all heads fused; output lane-dense [TB, N, H*D]."""
    TB, N, F_in = h_ref.shape
    H, HD = bcast_ref.shape
    rows = TB * N

    h2d = h_ref[...].reshape(rows, F_in)         # merge leading dims (layout-free, N%8==0)
    mask2d = mask_ref[...].reshape(rows, 3)

    # ONE fused MXU matmul: per-head values + compact attention-logit projections.
    #   proj[:, :HD]        = Wh   (all heads, lane-stacked)
    #   proj[:, HD:HD+H]    = Wh1  (one column per head)
    #   proj[:, HD+H:HD+2H] = Wh2
    proj = jnp.dot(h2d, w_ref[...], preferred_element_type=jnp.float32)   # [rows, HD+2H]

    # Row position within its batch element (f32 floor trick; exact for these sizes).
    ridx = jax.lax.broadcasted_iota(jnp.int32, (rows, 1), 0).astype(jnp.float32)
    quot = jnp.floor((ridx + 0.5) * (1.0 / N))
    pos = ridx - quot * jnp.float32(N)
    is_first = pos < 0.5
    is_last = pos > (N - 1.5)

    # torch.roll(+-1, dims=seq) per batch element: whole-array XLU sublane rotations
    # plus a boundary select so the wrap stays inside each element even when TB > 1.
    roll_p = pltpu.roll(proj, shift=1 % rows, axis=0)
    roll_pw = pltpu.roll(proj, shift=(rows - (N - 1)) % rows, axis=0)
    proj_p = jnp.where(is_first, roll_pw, roll_p)                  # predecessor view
    roll_n = pltpu.roll(proj, shift=(rows - 1) % rows, axis=0)
    roll_nw = pltpu.roll(proj, shift=(N - 1) % rows, axis=0)
    proj_n = jnp.where(is_last, roll_nw, roll_n)                   # successor view

    Wh = proj[:, :HD]
    Wh_p = proj_p[:, :HD]
    Wh_n = proj_n[:, :HD]
    wh1 = proj[:, HD:HD + H]                                       # [rows, H] (compact)
    wh2 = proj[:, HD + H:HD + 2 * H]
    wh2_p = proj_p[:, HD + H:HD + 2 * H]
    wh2_n = proj_n[:, HD + H:HD + 2 * H]

    def lrelu(x):
        return jnp.where(x > 0, x, ALPHA * x)

    neg = jnp.float32(NEG_INF)
    e0 = jnp.where(mask2d[:, 0:1] > 0, neg, lrelu(wh1 + wh2_p))    # predecessor slot
    e1 = jnp.where(mask2d[:, 1:2] > 0, neg, lrelu(wh1 + wh2))      # self slot
    e2 = jnp.where(mask2d[:, 2:3] > 0, neg, lrelu(wh1 + wh2_n))    # successor slot

    # Softmax over the 3 neighbor slots, entirely at compact [rows, H] width.
    m = jnp.maximum(jnp.maximum(e0, e1), e2)
    p0 = jnp.exp(e0 - m)
    p1 = jnp.exp(e1 - m)
    p2 = jnp.exp(e2 - m)
    denom = p0 + p1 + p2
    inv = pl.reciprocal(denom, approx=True)        # EUP vrcp (idle slot)
    inv = inv * (2.0 - denom * inv)                # one Newton step -> f32 accuracy

    # Broadcast [rows, H] weights to [rows, H*D] via tiny 0/1 block matmuls (MXU slack).
    bmat = bcast_ref[...]
    a0 = jnp.dot(p0 * inv, bmat, preferred_element_type=jnp.float32)
    a1 = jnp.dot(p1 * inv, bmat, preferred_element_type=jnp.float32)
    a2 = jnp.dot(p2 * inv, bmat, preferred_element_type=jnp.float32)

    # attention @ Wh_concat == weighted sum of the three rolled Wh views.
    # (attention dropout is identity in eval mode)
    h_new = a0 * Wh_p + a1 * Wh + a2 * Wh_n                        # [rows, HD]

    if apply_elu:                                                  # fused activation epilogue
        h_new = jnp.where(h_new > 0, h_new, jnp.exp(jnp.minimum(h_new, 0.0)) - 1.0)

    out_ref[...] = h_new.reshape(TB, N, HD).astype(out_ref.dtype)


def multi_head_op_attn(h, op_mask, W, a_stack, *, concat=True, activation="elu",
                       matmul_dtype=jnp.float32, batch_tile=None):
    """Pallas implementation of MultiHeadOpAttnBlock.forward (eval mode).

    h:       [B, N, F_in] float32
    op_mask: [B, N, 3]    (entries > 0 are masked out, as in the torch code)
    W:       [H, F_in, D] float32
    a_stack: [H, 2, D]    float32  (a_stack[:,0]=a[:D,0], a_stack[:,1]=a[D:,0])
    matmul_dtype: jnp.float32 or jnp.bfloat16 (MXU operands; accumulation stays f32)
    returns  [B, N, H*D] if concat else [B, N, D]
    """
    B, N, F_in = h.shape
    H, _, D = W.shape
    HD = H * D

    # Fused RHS [F_in, HD + 2H] = [ W_all | W @ a1 | W @ a2 ]  (A1/A2 folded in).
    W_all = jnp.transpose(W, (1, 0, 2)).reshape(F_in, HD)
    w1_cols = jnp.einsum('hfd,hd->fh', W, a_stack[:, 0, :])          # [F_in, H]
    w2_cols = jnp.einsum('hfd,hd->fh', W, a_stack[:, 1, :])          # [F_in, H]
    w_fused = jnp.concatenate([W_all, w1_cols, w2_cols], axis=1).astype(matmul_dtype)

    # 0/1 head -> lane broadcast matrix [H, HD]: bcast[h, h*D + d] = 1.
    bcast = jnp.kron(jnp.eye(H, dtype=jnp.float32), jnp.ones((1, D), jnp.float32))

    # Batch elements per grid step: fill the MXU M dim (~256 rows) but keep >= 2 grid
    # steps when B >= 2 (megacore / v7x two TensorCores). TB > 1 additionally needs
    # N to be sublane-tile aligned for the in-kernel merge reshape.
    if batch_tile is None:
        sub = 16 if matmul_dtype == jnp.bfloat16 else 8
        batch_tile = 1
        if N % sub == 0:
            target_rows = 256
            for cand in range(1, B + 1):
                if B % cand or cand * N > target_rows:
                    continue
                if B >= 2 and B // cand < 2:
                    continue
                batch_tile = cand
    if B % batch_tile:
        raise ValueError("batch_tile must divide the batch size")
    TB = batch_tile

    fuse_elu = concat and (activation == "elu" or activation is jax.nn.elu)
    kernel = functools.partial(_op_attn_kernel, apply_elu=fuse_elu)

    out = pl.pallas_call(
        kernel,
        out_shape=jax.ShapeDtypeStruct((B, N, HD), jnp.float32),
        grid=(B // TB,),
        in_specs=[
            pl.BlockSpec((TB, N, F_in), lambda b: (b, 0, 0)),         # h (TB elems/step)
            pl.BlockSpec((TB, N, 3), lambda b: (b, 0, 0)),            # op_mask
            pl.BlockSpec((F_in, HD + 2 * H), lambda b: (0, 0)),       # fused weights (resident)
            pl.BlockSpec((H, HD), lambda b: (0, 0)),                  # broadcast matrix
        ],
        out_specs=pl.BlockSpec((TB, N, HD), lambda b: (b, 0, 0)),     # lane-dense [B,N,H*D]
        compiler_params=pltpu.CompilerParams(
            dimension_semantics=("parallel",)),
    )(h.astype(matmul_dtype), op_mask.astype(jnp.float32), w_fused, bcast)

    if concat:
        result = out
    else:
        result = out.reshape(B, N, H, D).mean(axis=2)                 # [B, N, D]

    if fuse_elu:
        return result                                                 # elu already applied
    if activation is None:
        return result
    act = jax.nn.elu if activation == "elu" else activation
    return act(result)


def _reference(h, op_mask, W, a_stack, *, concat=True, activation=jax.nn.elu):
    """Pure-JAX reference mirroring the torch forward (eval mode)."""
    H = W.shape[0]
    outs = []
    for j in range(H):
        Wh = h @ W[j]                                                 # [B, N, D]
        a1, a2 = a_stack[j, 0], a_stack[j, 1]
        Wh_p = jnp.roll(Wh, 1, axis=1)
        Wh_n = jnp.roll(Wh, -1, axis=1)
        Wh1 = Wh @ a1                                                 # [B, N]
        Wh2 = Wh @ a2
        e = Wh1[..., None] + jnp.stack(
            [jnp.roll(Wh2, 1, axis=1), Wh2, jnp.roll(Wh2, -1, axis=1)], axis=-1)
        e = jnp.where(e > 0, e, ALPHA * e)
        e = jnp.where(op_mask > 0, jnp.float32(NEG_INF), e)
        attn = jax.nn.softmax(e, axis=-1)                             # [B, N, 3]
        h_new = (attn[..., 0:1] * Wh_p + attn[..., 1:2] * Wh + attn[..., 2:3] * Wh_n)
        outs.append(h_new)
    out = jnp.concatenate(outs, axis=-1) if concat else jnp.mean(jnp.stack(outs, -1), -1)
    return out if activation is None else activation(out)


if __name__ == "__main__":
    B, N, F_IN, D, H = 2, 8, 32, 16, 4   # batch, ops, input_dim, output_dim, num_heads

    key = jax.random.PRNGKey(0)
    k_h, k_m, k_w, k_a = jax.random.split(key, 4)

    h = jax.random.normal(k_h, (B, N, F_IN), dtype=jnp.float32)
    op_mask = (jax.random.uniform(k_m, (B, N, 3)) > 0.7).astype(jnp.float32)

    # Deterministic xavier_uniform_(gain=1.414) equivalents.
    gain = 1.414
    lim_W = gain * (6.0 / (F_IN + D)) ** 0.5
    W = jax.random.uniform(k_w, (H, F_IN, D), jnp.float32, -lim_W, lim_W)
    lim_a = gain * (6.0 / (2 * D + 1)) ** 0.5
    a_raw = jax.random.uniform(k_a, (H, 2 * D, 1), jnp.float32, -lim_a, lim_a)
    a_stack = jnp.stack([a_raw[:, :D, 0], a_raw[:, D:, 0]], axis=1)   # [H, 2, D]

    ref = _reference(h, op_mask, W, a_stack, concat=True, activation=jax.nn.elu)

    # Default path (f32 MXU, TB auto-selected -> 1 here so the grid keeps 2 steps).
    out = jax.block_until_ready(
        multi_head_op_attn(h, op_mask, W, a_stack, concat=True, activation="elu"))
    assert out.shape == (B, N, H * D), out.shape
    assert jnp.allclose(out, ref, rtol=1e-4, atol=1e-4), float(jnp.max(jnp.abs(out - ref)))

    # Batched-per-step path (TB=2 -> 1 grid step); exercises the per-element roll
    # boundary fix so the +-1 rolls do not wrap across batch elements.
    out_tb = jax.block_until_ready(
        multi_head_op_attn(h, op_mask, W, a_stack, concat=True, activation="elu",
                           batch_tile=2))
    assert jnp.allclose(out_tb, ref, rtol=1e-4, atol=1e-4), \
        float(jnp.max(jnp.abs(out_tb - ref)))

    # bf16 MXU operands with f32 accumulation / f32 epilogue (v6e/v7x production path).
    out_bf16 = jax.block_until_ready(
        multi_head_op_attn(h, op_mask, W, a_stack, concat=True, activation="elu",
                           matmul_dtype=jnp.bfloat16))
    assert jnp.allclose(out_bf16, ref, rtol=1.5e-1, atol=1.5e-1), \
        float(jnp.max(jnp.abs(out_bf16 - ref)))

    print("KERNEL_OK")
</pallas_src>

<mosaic_0001>
module attributes {stable_mosaic.version = 11 : i64} {
  func.func @_op_attn_kernel(%arg0: i32, %arg1: memref<1x8x32xf32, #tpu.memory_space<vmem>>, %arg2: memref<1x8x3xf32, #tpu.memory_space<vmem>>, %arg3: memref<32x72xf32, #tpu.memory_space<vmem>>, %arg4: memref<4x64xf32, #tpu.memory_space<vmem>>, %arg5: memref<1x8x64xf32, #tpu.memory_space<vmem>>) attributes {dimension_semantics = [#tpu.dimension_semantics<parallel>], iteration_bounds = array<i64: 2>, scalar_prefetch = 0 : i64, scratch_operands = 0 : i64, tpu.core_type = #tpu.core_type<tc>, window_params = [{transform_indices = @transform_0, window_bounds = array<i64: 1, 8, 32>}, {transform_indices = @transform_1, window_bounds = array<i64: 1, 8, 3>}, {pipeline_mode = #tpu.pipeline_mode<synchronous>, transform_indices = @transform_2, window_bounds = array<i64: 32, 72>}, {pipeline_mode = #tpu.pipeline_mode<synchronous>, transform_indices = @transform_3, window_bounds = array<i64: 4, 64>}, {transform_indices = @transform_4, window_bounds = array<i64: 1, 8, 64>}]} {
    %c0 = arith.constant 0 : index
    %c0_0 = arith.constant 0 : index
    %c0_1 = arith.constant 0 : index
    %0 = vector.load %arg1[%c0, %c0_0, %c0_1] : memref<1x8x32xf32, #tpu.memory_space<vmem>>, vector<1x8x32xf32>
    %1 = vector.shape_cast %0 : vector<1x8x32xf32> to vector<8x32xf32>
    %c0_2 = arith.constant 0 : index
    %c0_3 = arith.constant 0 : index
    %c0_4 = arith.constant 0 : index
    %2 = vector.load %arg2[%c0_2, %c0_3, %c0_4] : memref<1x8x3xf32, #tpu.memory_space<vmem>>, vector<1x8x3xf32>
    %3 = vector.shape_cast %2 : vector<1x8x3xf32> to vector<8x3xf32>
    %c0_5 = arith.constant 0 : index
    %c0_6 = arith.constant 0 : index
    %4 = vector.load %arg3[%c0_5, %c0_6] : memref<32x72xf32, #tpu.memory_space<vmem>>, vector<32x72xf32>
    %cst = arith.constant dense<0.000000e+00> : vector<8x72xf32>
    %5 = tpu.matmul %1, %4, %cst {dimension_numbers = #tpu.dot_dimension_numbers<[1], [0], [0], [1], [0, 0, 1, 1], [], []>} : vector<8x32xf32>, vector<32x72xf32>, vector<8x72xf32> -> vector<8x72xf32>
    %6 = tpu.iota {dimensions = array<i32: 0>} : vector<8x1xi32>
    %7 = arith.sitofp %6 : vector<8x1xi32> to vector<8x1xf32>
    %cst_7 = arith.constant 5.000000e-01 : f32
    %8 = vector.broadcast %cst_7 : f32 to vector<8x1xf32>
    %9 = arith.addf %7, %8 : vector<8x1xf32>
    %cst_8 = arith.constant 1.250000e-01 : f32
    %10 = vector.broadcast %cst_8 : f32 to vector<8x1xf32>
    %11 = arith.mulf %9, %10 : vector<8x1xf32>
    %12 = math.floor %11 : vector<8x1xf32>
    %cst_9 = arith.constant 8.000000e+00 : f32
    %13 = vector.broadcast %cst_9 : f32 to vector<8x1xf32>
    %14 = arith.mulf %12, %13 : vector<8x1xf32>
    %15 = arith.subf %7, %14 : vector<8x1xf32>
    %cst_10 = arith.constant 5.000000e-01 : f32
    %16 = vector.broadcast %cst_10 : f32 to vector<8x1xf32>
    %17 = arith.cmpf olt, %15, %16 : vector<8x1xf32>
    %cst_11 = arith.constant 6.500000e+00 : f32
    %18 = vector.broadcast %cst_11 : f32 to vector<8x1xf32>
    %19 = arith.cmpf ogt, %15, %18 : vector<8x1xf32>
    %c1_i32 = arith.constant 1 : i32
    %20 = tpu.dynamic_rotate %5 by %c1_i32 dim 0 : vector<8x72xf32>, i32 -> vector<8x72xf32>
    %c1_i32_12 = arith.constant 1 : i32
    %21 = tpu.dynamic_rotate %5 by %c1_i32_12 dim 0 : vector<8x72xf32>, i32 -> vector<8x72xf32>
    %22 = vector.shape_cast %17 : vector<8x1xi1> to vector<8x1xi1>
    %23 = vector.broadcast %22 : vector<8x1xi1> to vector<8x72xi1>
    %24 = arith.select %23, %21, %20 : vector<8x72xi1>, vector<8x72xf32>
    %c7_i32 = arith.constant 7 : i32
    %25 = tpu.dynamic_rotate %5 by %c7_i32 dim 0 : vector<8x72xf32>, i32 -> vector<8x72xf32>
    %c7_i32_13 = arith.constant 7 : i32
    %26 = tpu.dynamic_rotate %5 by %c7_i32_13 dim 0 : vector<8x72xf32>, i32 -> vector<8x72xf32>
    %27 = vector.shape_cast %19 : vector<8x1xi1> to vector<8x1xi1>
    %28 = vector.broadcast %27 : vector<8x1xi1> to vector<8x72xi1>
    %29 = arith.select %28, %26, %25 : vector<8x72xi1>, vector<8x72xf32>
    %30 = vector.extract_strided_slice %5 {offsets = [0, 0], sizes = [8, 64], strides = [1, 1]} : vector<8x72xf32> to vector<8x64xf32>
    %31 = vector.extract_strided_slice %24 {offsets = [0, 0], sizes = [8, 64], strides = [1, 1]} : vector<8x72xf32> to vector<8x64xf32>
    %32 = vector.extract_strided_slice %29 {offsets = [0, 0], sizes = [8, 64], strides = [1, 1]} : vector<8x72xf32> to vector<8x64xf32>
    %33 = vector.extract_strided_slice %5 {offsets = [0, 64], sizes = [8, 4], strides = [1, 1]} : vector<8x72xf32> to vector<8x4xf32>
    %34 = vector.extract_strided_slice %5 {offsets = [0, 68], sizes = [8, 4], strides = [1, 1]} : vector<8x72xf32> to vector<8x4xf32>
    %35 = vector.extract_strided_slice %24 {offsets = [0, 68], sizes = [8, 4], strides = [1, 1]} : vector<8x72xf32> to vector<8x4xf32>
    %36 = vector.extract_strided_slice %29 {offsets = [0, 68], sizes = [8, 4], strides = [1, 1]} : vector<8x72xf32> to vector<8x4xf32>
    %37 = vector.extract_strided_slice %3 {offsets = [0, 0], sizes = [8, 1], strides = [1, 1]} : vector<8x3xf32> to vector<8x1xf32>
    %cst_14 = arith.constant 0.000000e+00 : f32
    %38 = vector.broadcast %cst_14 : f32 to vector<8x1xf32>
    %39 = arith.cmpf ogt, %37, %38 : vector<8x1xf32>
    %40 = arith.addf %33, %35 : vector<8x4xf32>
    %cst_15 = arith.constant 0.000000e+00 : f32
    %41 = vector.broadcast %cst_15 : f32 to vector<8x4xf32>
    %42 = arith.cmpf ogt, %40, %41 : vector<8x4xf32>
    %cst_16 = arith.constant 2.000000e-01 : f32
    %43 = vector.broadcast %cst_16 : f32 to vector<8x4xf32>
    %44 = arith.mulf %43, %40 : vector<8x4xf32>
    %45 = arith.select %42, %40, %44 : vector<8x4xi1>, vector<8x4xf32>
    %cst_17 = arith.constant -9.000000e+15 : f32
    %46 = vector.shape_cast %39 : vector<8x1xi1> to vector<8x1xi1>
    %47 = vector.broadcast %46 : vector<8x1xi1> to vector<8x4xi1>
    %48 = vector.broadcast %cst_17 : f32 to vector<8x4xf32>
    %49 = arith.select %47, %48, %45 : vector<8x4xi1>, vector<8x4xf32>
    %50 = vector.extract_strided_slice %3 {offsets = [0, 1], sizes = [8, 1], strides = [1, 1]} : vector<8x3xf32> to vector<8x1xf32>
    %cst_18 = arith.constant 0.000000e+00 : f32
    %51 = vector.broadcast %cst_18 : f32 to vector<8x1xf32>
    %52 = arith.cmpf ogt, %50, %51 : vector<8x1xf32>
    %53 = arith.addf %33, %34 : vector<8x4xf32>
    %cst_19 = arith.constant 0.000000e+00 : f32
    %54 = vector.broadcast %cst_19 : f32 to vector<8x4xf32>
    %55 = arith.cmpf ogt, %53, %54 : vector<8x4xf32>
    %cst_20 = arith.constant 2.000000e-01 : f32
    %56 = vector.broadcast %cst_20 : f32 to vector<8x4xf32>
    %57 = arith.mulf %56, %53 : vector<8x4xf32>
    %58 = arith.select %55, %53, %57 : vector<8x4xi1>, vector<8x4xf32>
    %cst_21 = arith.constant -9.000000e+15 : f32
    %59 = vector.shape_cast %52 : vector<8x1xi1> to vector<8x1xi1>
    %60 = vector.broadcast %59 : vector<8x1xi1> to vector<8x4xi1>
    %61 = vector.broadcast %cst_21 : f32 to vector<8x4xf32>
    %62 = arith.select %60, %61, %58 : vector<8x4xi1>, vector<8x4xf32>
    %63 = vector.extract_strided_slice %3 {offsets = [0, 2], sizes = [8, 1], strides = [1, 1]} : vector<8x3xf32> to vector<8x1xf32>
    %cst_22 = arith.constant 0.000000e+00 : f32
    %64 = vector.broadcast %cst_22 : f32 to vector<8x1xf32>
    %65 = arith.cmpf ogt, %63, %64 : vector<8x1xf32>
    %66 = arith.addf %33, %36 : vector<8x4xf32>
    %cst_23 = arith.constant 0.000000e+00 : f32
    %67 = vector.broadcast %cst_23 : f32 to vector<8x4xf32>
    %68 = arith.cmpf ogt, %66, %67 : vector<8x4xf32>
    %cst_24 = arith.constant 2.000000e-01 : f32
    %69 = vector.broadcast %cst_24 : f32 to vector<8x4xf32>
    %70 = arith.mulf %69, %66 : vector<8x4xf32>
    %71 = arith.select %68, %66, %70 : vector<8x4xi1>, vector<8x4xf32>
    %cst_25 = arith.constant -9.000000e+15 : f32
    %72 = vector.shape_cast %65 : vector<8x1xi1> to vector<8x1xi1>
    %73 = vector.broadcast %72 : vector<8x1xi1> to vector<8x4xi1>
    %74 = vector.broadcast %cst_25 : f32 to vector<8x4xf32>
    %75 = arith.select %73, %74, %71 : vector<8x4xi1>, vector<8x4xf32>
    %76 = arith.maximumf %49, %62 : vector<8x4xf32>
    %77 = arith.maximumf %76, %75 : vector<8x4xf32>
    %78 = arith.subf %49, %77 : vector<8x4xf32>
    %79 = math.exp %78 : vector<8x4xf32>
    %80 = arith.subf %62, %77 : vector<8x4xf32>
    %81 = math.exp %80 : vector<8x4xf32>
    %82 = arith.subf %75, %77 : vector<8x4xf32>
    %83 = math.exp %82 : vector<8x4xf32>
    %84 = arith.addf %79, %81 : vector<8x4xf32>
    %85 = arith.addf %84, %83 : vector<8x4xf32>
    %86 = tpu.reciprocal %85 {approx = true} : vector<8x4xf32> -> vector<8x4xf32>
    %87 = arith.mulf %85, %86 : vector<8x4xf32>
    %cst_26 = arith.constant 2.000000e+00 : f32
    %88 = vector.broadcast %cst_26 : f32 to vector<8x4xf32>
    %89 = arith.subf %88, %87 : vector<8x4xf32>
    %90 = arith.mulf %86, %89 : vector<8x4xf32>
    %c0_27 = arith.constant 0 : index
    %c0_28 = arith.constant 0 : index
    %91 = vector.load %arg4[%c0_27, %c0_28] : memref<4x64xf32, #tpu.memory_space<vmem>>, vector<4x64xf32>
    %92 = arith.mulf %79, %90 : vector<8x4xf32>
    %cst_29 = arith.constant dense<0.000000e+00> : vector<8x64xf32>
    %93 = tpu.matmul %92, %91, %cst_29 {dimension_numbers = #tpu.dot_dimension_numbers<[1], [0], [0], [1], [0, 0, 1, 1], [], []>} : vector<8x4xf32>, vector<4x64xf32>, vector<8x64xf32> -> vector<8x64xf32>
    %94 = arith.mulf %81, %90 : vector<8x4xf32>
    %cst_30 = arith.constant dense<0.000000e+00> : vector<8x64xf32>
    %95 = tpu.matmul %94, %91, %cst_30 {dimension_numbers = #tpu.dot_dimension_numbers<[1], [0], [0], [1], [0, 0, 1, 1], [], []>} : vector<8x4xf32>, vector<4x64xf32>, vector<8x64xf32> -> vector<8x64xf32>
    %96 = arith.mulf %83, %90 : vector<8x4xf32>
    %cst_31 = arith.constant dense<0.000000e+00> : vector<8x64xf32>
    %97 = tpu.matmul %96, %91, %cst_31 {dimension_numbers = #tpu.dot_dimension_numbers<[1], [0], [0], [1], [0, 0, 1, 1], [], []>} : vector<8x4xf32>, vector<4x64xf32>, vector<8x64xf32> -> vector<8x64xf32>
    %98 = arith.mulf %93, %31 : vector<8x64xf32>
    %99 = arith.mulf %95, %30 : vector<8x64xf32>
    %100 = arith.addf %98, %99 : vector<8x64xf32>
    %101 = arith.mulf %97, %32 : vector<8x64xf32>
    %102 = arith.addf %100, %101 : vector<8x64xf32>
    %cst_32 = arith.constant 0.000000e+00 : f32
    %103 = vector.broadcast %cst_32 : f32 to vector<8x64xf32>
    %104 = arith.cmpf ogt, %102, %103 : vector<8x64xf32>
    %cst_33 = arith.constant 0.000000e+00 : f32
    %105 = vector.broadcast %cst_33 : f32 to vector<8x64xf32>
    %106 = arith.minimumf %102, %105 : vector<8x64xf32>
    %107 = math.exp %106 : vector<8x64xf32>
    %cst_34 = arith.constant 1.000000e+00 : f32
    %108 = vector.broadcast %cst_34 : f32 to vector<8x64xf32>
    %109 = arith.subf %107, %108 : vector<8x64xf32>
    %110 = arith.select %104, %102, %109 : vector<8x64xi1>, vector<8x64xf32>
    %111 = vector.shape_cast %110 : vector<8x64xf32> to vector<1x8x64xf32>
    %c0_35 = arith.constant 0 : index
    %c0_36 = arith.constant 0 : index
    %c0_37 = arith.constant 0 : index
    %112 = vector.load %arg5[%c0_35, %c0_36, %c0_37] : memref<1x8x64xf32, #tpu.memory_space<vmem>>, vector<1x8x64xf32>
    tpu.vector_store %arg5[%c0_35, %c0_36, %c0_37], %111 {strides = array<i32>} : memref<1x8x64xf32, #tpu.memory_space<vmem>>, vector<1x8x64xf32>,
    return
  }
  func.func @transform_0(%arg0: i32) -> (i32, i32, i32) {
    %c0_i32 = arith.constant 0 : i32
    %c0_i32_0 = arith.constant 0 : i32
    %c0_i32_1 = arith.constant 0 : i32
    return %arg0, %c0_i32, %c0_i32_0 : i32, i32, i32
  }
  func.func @transform_1(%arg0: i32) -> (i32, i32, i32) {
    %c0_i32 = arith.constant 0 : i32
    %c0_i32_0 = arith.constant 0 : i32
    %c0_i32_1 = arith.constant 0 : i32
    return %arg0, %c0_i32, %c0_i32_0 : i32, i32, i32
  }
  func.func @transform_2(%arg0: i32) -> (i32, i32) {
    %c0_i32 = arith.constant 0 : i32
    %c0_i32_0 = arith.constant 0 : i32
    %c0_i32_1 = arith.constant 0 : i32
    return %c0_i32, %c0_i32_0 : i32, i32
  }
  func.func @transform_3(%arg0: i32) -> (i32, i32) {
    %c0_i32 = arith.constant 0 : i32
    %c0_i32_0 = arith.constant 0 : i32
    %c0_i32_1 = arith.constant 0 : i32
    return %c0_i32, %c0_i32_0 : i32, i32
  }
  func.func @transform_4(%arg0: i32) -> (i32, i32, i32) {
    %c0_i32 = arith.constant 0 : i32
    %c0_i32_0 = arith.constant 0 : i32
    %c0_i32_1 = arith.constant 0 : i32
    return %arg0, %c0_i32, %c0_i32_0 : i32, i32, i32
  }
}

</mosaic_0001>

<llo_original>
// kernel: tpu_custom_call.1
$region0: #{tpu_custom_call.1}
  #allocation0 [shape = 'u32[]', space=smem, size = 0x4, offset = 0x4, fixed_abs, tag = 'smem constant byte address 0x4 - core index']
  #allocation1 [shape = 'u32[144,128]{1,0:T(1,128)}', space=vmem, size = 0x12000, scoped, tag = 'internal scratch']
  %s0 = inlined_call_operand.vmem [shape: f32[2,8,32], index: 0, kind: input, shape index: {}]
  %s1 = inlined_call_operand.vmem [shape: f32[2,8,3], index: 1, kind: input, shape index: {}]
  %s2 = inlined_call_operand.hbm [shape: f32[32,72], index: 2, kind: input, shape index: {}]
  %s3 = inlined_call_operand.vmem [shape: f32[4,64], index: 3, kind: input, shape index: {}]
  %s4 = inlined_call_operand.hbm [shape: f32[2,8,64], index: 4, kind: output, shape index: {}]
  %s5 = sld [smem:[#allocation0]]
  $region53: #{tpu_custom_call.1} parent=0
    _
  %s7 = ssub.s32 1, %s5
  %s8 = scalar_select 0, %s7, %s5
  $region1: #{tpu_custom_call.1} parent=0
    #allocation2 [shape = 'u8[16384]{0}', space=vmem, size = 0x4000, scoped, tag = 'input window, operand 2, single buffered']
    #allocation3 [shape = 's32[2]{0}', space=sflag, size = 0x8, scoped, tag = 'scoped memory for tpu_custom_call.1']
    #allocation4 [shape = 's32[2]{0}', space=sflag, size = 0x8, scoped, tag = 'scoped memory for tpu_custom_call.1']
    #allocation5 [shape = 'u8[8192]{0}', space=vmem, size = 0x2000, scoped, tag = 'output window, operand 0']
    %9 = vsyncpa [#allocation3], 0
    %10 = vsyncpa [#allocation4], 0
    %s11 = scalar_lea.sflag [#allocation4], 1
    %12 = vsyncpa %s11, 0
    loop: start=0, step=1, limit=4
    $region2: #{tpu_custom_call.1} parent=1 // loop_pre_header
      _
    $region3: #{tpu_custom_call.1} parent=1 // loop_header
      %s14 = sphi 0, %s18
      %p15 = scmp.ge.s32.totalorder %s14, 4
      %s24 = sphi 0, %s26
      %s27 = sphi 0, %s24
      %s28 = sphi 0, %s27
      %s44 = sphi 0, %s28
      %s50 = sphi 0, %s52
      %s53 = sphi 0, %s50
      %s54 = sphi 0, %s53
      %s70 = sphi 0, %s54
      %s74 = sphi 0, %s74
      %s76 = sphi 0, %s74
      %s77 = sphi 0, %s76
      %s91 = sphi 0, %s77
      %s95 = sphi 0, %s95
      %s97 = sphi 0, %s95
      %s98 = sphi 0, %s97
      %s112 = sphi 0, %s98
      %s118 = sphi 0, %s120
      %s121 = sphi 0, %s118
      %s122 = sphi 0, %s121
      %s138 = sphi 0, %s122
    $region4: #{tpu_custom_call.1} parent=1 // loop_header_branch
      %17 = sbr.rel (%p15) target = $region8
    $region5: #{tpu_custom_call.1} parent=1 // loop_body
      %s19 = ssub.s32 %s14, 1
      %s20 = ssub.s32 %s14, 2
      %s21 = sadd.s32 %s14, 1
      %s22 = ssub.s32 %s14, %s21
      %p23 = scmp.eq.s32.totalorder %s22, 0
      %s25 = sadd.s32 %s24, 1
      %s26 = scalar_select %p23, %s24, %s25
      %p29 = pneg %p23
      %p30 = scmp.eq.s32.totalorder %s14, 1
      %p31 = por %p29, %p30
      %p32 = scmp.ne.s32.totalorder %s24, %s27
      %p33 = scmp.eq.s32.totalorder %s14, 0
      %p34 = por %p32, %p33
      %p35 = scmp.ne.s32.totalorder %s24, %s27
      %p36 = scmp.eq.s32.totalorder %s19, 1
      %p37 = por %p35, %p36
      %p38 = scmp.ne.s32.totalorder %s27, %s28
      %p39 = scmp.eq.s32.totalorder %s19, 0
      %p40 = por %p38, %p39
      %p41 = scmp.ne.s32.totalorder %s27, %s28
      %p42 = scmp.eq.s32.totalorder %s20, 1
      %p43 = por %p41, %p42
      %p45 = scmp.ne.s32.totalorder %s28, %s44
      %p46 = scmp.eq.s32.totalorder %s20, 0
      %p47 = por %p45, %p46
      %s48 = ssub.s32 %s14, %s21
      %p49 = scmp.eq.s32.totalorder %s48, 0
      %s51 = sadd.s32 %s50, 1
      %s52 = scalar_select %p49, %s50, %s51
      %p55 = pneg %p49
      %p56 = scmp.eq.s32.totalorder %s14, 1
      %p57 = por %p55, %p56
      %p58 = scmp.ne.s32.totalorder %s50, %s53
      %p59 = scmp.eq.s32.totalorder %s14, 0
      %p60 = por %p58, %p59
      %p61 = scmp.ne.s32.totalorder %s50, %s53
      %p62 = scmp.eq.s32.totalorder %s19, 1
      %p63 = por %p61, %p62
      %p64 = scmp.ne.s32.totalorder %s53, %s54
      %p65 = scmp.eq.s32.totalorder %s19, 0
      %p66 = por %p64, %p65
      %p67 = scmp.ne.s32.totalorder %s53, %s54
      %p68 = scmp.eq.s32.totalorder %s20, 1
      %p69 = por %p67, %p68
      %p71 = scmp.ne.s32.totalorder %s54, %s70
      %p72 = scmp.eq.s32.totalorder %s20, 0
      %p73 = por %p71, %p72
      %s75 = sadd.s32 %s74, 1
      %p78 = scmp.eq.s32.totalorder %s14, 1
      %p79 = scmp.ne.s32.totalorder %s74, %s76
      %p80 = scmp.eq.s32.totalorder %s14, 0
      %p81 = por %p79, %p80
      %p82 = scmp.ne.s32.totalorder %s74, %s76
      %p83 = scmp.eq.s32.totalorder %s19, 1
      %p84 = por %p82, %p83
      %p85 = scmp.ne.s32.totalorder %s76, %s77
      %p86 = scmp.eq.s32.totalorder %s19, 0
      %p87 = por %p85, %p86
      %p88 = scmp.ne.s32.totalorder %s76, %s77
      %p89 = scmp.eq.s32.totalorder %s20, 1
      %p90 = por %p88, %p89
      %p92 = scmp.ne.s32.totalorder %s77, %s91
      %p93 = scmp.eq.s32.totalorder %s20, 0
      %p94 = por %p92, %p93
      %s96 = sadd.s32 %s95, 1
      %p99 = scmp.eq.s32.totalorder %s14, 1
      %p100 = scmp.ne.s32.totalorder %s95, %s97
      %p101 = scmp.eq.s32.totalorder %s14, 0
      %p102 = por %p100, %p101
      %p103 = scmp.ne.s32.totalorder %s95, %s97
      %p104 = scmp.eq.s32.totalorder %s19, 1
      %p105 = por %p103, %p104
      %p106 = scmp.ne.s32.totalorder %s97, %s98
      %p107 = scmp.eq.s32.totalorder %s19, 0
      %p108 = por %p106, %p107
      %p109 = scmp.ne.s32.totalorder %s97, %s98
      %p110 = scmp.eq.s32.totalorder %s20, 1
      %p111 = por %p109, %p110
      %p113 = scmp.ne.s32.totalorder %s98, %s112
      %p114 = scmp.eq.s32.totalorder %s20, 0
      %p115 = por %p113, %p114
      %s116 = ssub.s32 %s14, %s21
      %p117 = scmp.eq.s32.totalorder %s116, 0
      %s119 = sadd.s32 %s118, 1
      %s120 = scalar_select %p117, %s118, %s119
      %p123 = pneg %p117
      %p124 = scmp.eq.s32.totalorder %s14, 1
      %p125 = por %p123, %p124
      %p126 = scmp.ne.s32.totalorder %s118, %s121
      %p127 = scmp.eq.s32.totalorder %s14, 0
      %p128 = por %p126, %p127
      %p129 = scmp.ne.s32.totalorder %s118, %s121
      %p130 = scmp.eq.s32.totalorder %s19, 1
      %p131 = por %p129, %p130
      %p132 = scmp.ne.s32.totalorder %s121, %s122
      %p133 = scmp.eq.s32.totalorder %s19, 0
      %p134 = por %p132, %p133
      %p135 = scmp.ne.s32.totalorder %s121, %s122
      %p136 = scmp.eq.s32.totalorder %s20, 1
      %p137 = por %p135, %p136
      %p139 = scmp.ne.s32.totalorder %s122, %s138
      %p140 = scmp.eq.s32.totalorder %s20, 0
      %p141 = por %p139, %p140
      %p142 = scmp.le.s32.totalorder 1, %s14
      %p143 = scmp.lt.s32.totalorder %s14, 3
      %p144 = pnand %p142, %p143
      %p145 = pneg %p144
      // Predicated region
      $region9: #{tpu_custom_call.1} parent=5 // pred_check
        _
      $region10: #{tpu_custom_call.1} parent=5 // pred_check_branch
        %147 = sbr.rel (%p144) target = $region12
      $region11: #{tpu_custom_call.1} parent=5 // pred_region
        %s148 = ssub.s32 %s14, 1
        // Predicated region
        $region13: #{tpu_custom_call.1} parent=11 // pred_check
          %p149 = pneg %p87
        $region14: #{tpu_custom_call.1} parent=11 // pred_check_branch
          %151 = sbr.rel (%p149) target = $region16
        $region15: #{tpu_custom_call.1} parent=11 // pred_region
          %s153 = ssub.s32 512, 512
          %154 = vsyncadd [#allocation3], %s153
          %s155 = sshll.u32 [#allocation2], 4
          %s156 = int_to_ptr.vmem [resolvable:$true] %s155
          %161 = dma.hbm_to_vmem [thread:$0]  %s2, 512, %s156, [#allocation3], 128, 128, 8
        $region16: #{tpu_custom_call.1} parent=11 // pred_fallthru
          _
        // Predicated region
        $region17: #{tpu_custom_call.1} parent=11 // pred_check
          %p162 = pneg %p108
        $region18: #{tpu_custom_call.1} parent=11 // pred_check_branch
          %164 = sbr.rel (%p162) target = $region20
        $region19: #{tpu_custom_call.1} parent=11 // pred_region
          _
        $region20: #{tpu_custom_call.1} parent=11 // pred_fallthru
          _
      $region12: #{tpu_custom_call.1} parent=5 // pred_fallthru
        _
      %p165 = scmp.lt.s32.totalorder %s14, 2
      // Predicated region
      $region21: #{tpu_custom_call.1} parent=5 // pred_check
        %p166 = pneg %p165
      $region22: #{tpu_custom_call.1} parent=5 // pred_check_branch
        %168 = sbr.rel (%p166) target = $region24
      $region23: #{tpu_custom_call.1} parent=5 // pred_region
        // Predicated region
        $region25: #{tpu_custom_call.1} parent=23 // pred_check
          %p169 = pneg %p34
        $region26: #{tpu_custom_call.1} parent=23 // pred_check_branch
          %171 = sbr.rel (%p169) target = $region28
        $region27: #{tpu_custom_call.1} parent=23 // pred_region
          %p172 = scmp.lt.s32.totalorder %s14, 1
          %s173 = scalar_select %p172, %s14, 1
          %s174 = smul.addr %s173, 8
          %s175 = scalar_lea.vmem %s0, %s174
        $region28: #{tpu_custom_call.1} parent=23 // pred_fallthru
          _
        // Predicated region
        $region29: #{tpu_custom_call.1} parent=23 // pred_check
          %p176 = pneg %p60
        $region30: #{tpu_custom_call.1} parent=23 // pred_check_branch
          %178 = sbr.rel (%p176) target = $region32
        $region31: #{tpu_custom_call.1} parent=23 // pred_region
          %p179 = scmp.lt.s32.totalorder %s14, 1
          %s180 = scalar_select %p179, %s14, 1
          %s181 = smul.addr %s180, 8
          %s182 = scalar_lea.vmem %s1, %s181
        $region32: #{tpu_custom_call.1} parent=23 // pred_fallthru
          _
      $region24: #{tpu_custom_call.1} parent=5 // pred_fallthru
        _
      %p183 = scmp.le.s32.totalorder 1, %s14
      %p184 = scmp.lt.s32.totalorder %s14, 3
      %p185 = pnand %p183, %p184
      %p186 = pneg %p185
      // Predicated region
      $region33: #{tpu_custom_call.1} parent=5 // pred_check
        _
      $region34: #{tpu_custom_call.1} parent=5 // pred_check_branch
        %188 = sbr.rel (%p185) target = $region36
      $region35: #{tpu_custom_call.1} parent=5 // pred_region
        %s189 = ssub.s32 %s14, 1
        // Predicated region
        $region37: #{tpu_custom_call.1} parent=35 // pred_check
          %p190 = pneg %p87
        $region38: #{tpu_custom_call.1} parent=35 // pred_check_branch
          %192 = sbr.rel (%p190) target = $region40
        $region39: #{tpu_custom_call.1} parent=35 // pred_region
          %193 = dma.done [#allocation3], 512
        $region40: #{tpu_custom_call.1} parent=35 // pred_fallthru
          _
        %p194 = scmp.lt.s32.totalorder %s19, 1
        %s195 = scalar_select %p194, %s19, 1
        %s196 = smul.addr %s195, 8
        %s197 = scalar_lea.vmem %s0, %s196
        %p198 = pneg %p40
        %p199 = pneg %p37
        %p200 = scmp.lt.s32.totalorder %s19, 1
        %s201 = scalar_select %p200, %s19, 1
        %s202 = smul.addr %s201, 8
        %s203 = scalar_lea.vmem %s1, %s202
        %p204 = pneg %p66
        %p205 = pneg %p63
        %p206 = pneg %p87
        %p207 = pneg %p84
        %p208 = pneg %p108
        %p209 = pneg %p105
        %p210 = pneg %p134
        %p211 = pneg %p131
        %s212 = sand.u32 %s121, 1
        %s213 = scalar_lea.sflag [#allocation4], %s212
        %s214 = sand.u32 %s121, 1
        %s215 = smul.addr %s214, 8
        %s216 = scalar_lea.vmem [#allocation5], %s215
        %p217 = scmp.lt.s32.totalorder %s19, 1
        %s218 = scalar_select %p217, %s19, 1
        %s219 = smul.addr %s218, 8
        %s220 = scalar_lea.vmem %s0, %s219
        %p221 = scmp.lt.s32.totalorder %s19, 1
        %s222 = scalar_select %p221, %s19, 1
        %s223 = smul.addr %s222, 8
        %s224 = scalar_lea.vmem %s1, %s223
        %v225 = vld [vmem:[%s220] sm:$0xff]
        %v226 = vld [vmem:[%s224] sm:$0xff]
        %v227 = vld [vmem:[#allocation2] sm:$0xff]
        %v228 = vld [vmem:[#allocation2 + $0x8] sm:$0xff]
        %v229 = vld [vmem:[#allocation2 + $0x10] sm:$0xff]
        %v230 = vld [vmem:[#allocation2 + $0x18] sm:$0xff]
        %vm231 = vcmask 261120
        %v233 = vsel %vm231, %v225, 0
        %235 = vmatprep.subr.mxu0 0.0
        %236 = vmatpush1.msra.mxu0 0.0
        %237 = vmatprep.subr.mxu0 0.0
        %238 = vmatpush1.msra.mxu0 0.0
        %239 = vmatprep.subr.mxu0 0.0
        %240 = vmatpush1.msra.mxu0 0.0
        %241 = vmatprep.subr.mxu0 0.0
        %242 = vmatpush1.msra.mxu0 0.0
        %243 = vmatprep.subr.mxu0 0.0
        %244 = vmatpush1.msra.mxu0 0.0
        %245 = vmatprep.subr.mxu0 0.0
        %246 = vmatpush1.msra.mxu0 0.0
        %247 = vmatprep.subr.mxu0 0.0
        %248 = vmatpush1.msra.mxu0 0.0
        %249 = vmatprep.subr.mxu0 0.0
        %250 = vmatpush1.msra.mxu0 0.0
        %251 = vmatprep.subr.mxu0 0.0
        %252 = vmatpush1.msra.mxu0 0.0
        %253 = vmatprep.subr.mxu0 0.0
        %254 = vmatpush1.msra.mxu0 0.0
        %255 = vmatprep.subr.mxu0 0.0
        %256 = vmatpush1.msra.mxu0 0.0
        %257 = vmatprep.subr.mxu0 0.0
        %258 = vmatpush1.msra.mxu0 0.0
        %259 = vmatprep.subr.mxu0 0.0
        %260 = vmatpush1.msra.mxu0 %v230
        %261 = vmatprep.subr.mxu0 0.0
        %262 = vmatpush1.msra.mxu0 %v229
        %263 = vmatprep.subr.mxu0 0.0
        %264 = vmatpush1.msra.mxu0 %v228
        %265 = vmatprep.subr.mxu0 0.0
        %266 = vmatpush1.msra.mxu0 %v227
        %267 = vmatprep.subr.mxu0 0.0
        %268 = vmatpush2.msra.mxu0 0.0
        %269 = vmatprep.subr.mxu0 0.0
        %270 = vmatpush2.msra.mxu0 0.0
        %271 = vmatprep.subr.mxu0 0.0
        %272 = vmatpush2.msra.mxu0 0.0
        %273 = vmatprep.subr.mxu0 0.0
        %274 = vmatpush2.msra.mxu0 0.0
        %275 = vmatprep.subr.mxu0 0.0
        %276 = vmatpush2.msra.mxu0 0.0
        %277 = vmatprep.subr.mxu0 0.0
        %278 = vmatpush2.msra.mxu0 0.0
        %279 = vmatprep.subr.mxu0 0.0
        %280 = vmatpush2.msra.mxu0 0.0
        %281 = vmatprep.subr.mxu0 0.0
        %282 = vmatpush2.msra.mxu0 0.0
        %283 = vmatprep.subr.mxu0 0.0
        %284 = vmatpush2.msra.mxu0 0.0
        %285 = vmatprep.subr.mxu0 0.0
        %286 = vmatpush2.msra.mxu0 0.0
        %287 = vmatprep.subr.mxu0 0.0
        %288 = vmatpush2.msra.mxu0 0.0
        %289 = vmatprep.subr.mxu0 0.0
        %290 = vmatpush2.msra.mxu0 0.0
        %291 = vmatprep.subr.mxu0 0.0
        %292 = vmatpush2.msra.mxu0 0.0
        %293 = vmatprep.subr.mxu0 0.0
        %294 = vmatpush2.msra.mxu0 0.0
        %295 = vmatprep.subr.mxu0 0.0
        %296 = vmatpush2.msra.mxu0 0.0
        %297 = vmatprep.subr.mxu0 0.0
        %298 = vmatpush2.msra.mxu0 0.0
        %299 = vmatprep.mubr.f32.mxu0 0.0
        %300 = vmatmul.mubr.f32.gmra.mxu0 %v233
        %v301 = vpop.f32.mrf.mxu0
        %v302 = vadd.f32 0.0, %v301
        %v303 = vpop.f32.mrf.mxu0
        %304 = vdwg.mxu0
        %v305 = vrot.slane %v302, 7
        %v306 = vrot.slane %v302, 1
        %vm307 = vcmp.gt.f32.partialorder %v226, 0.0
        %309 = vrot.lane.b32.xlu0 %v305, 124
        %v310 = vpop.permute.xlu0 %309
        %v312 = vadd.f32 %v302, %v310
        %vm313 = vcmp.gt.f32.partialorder %v312, 0.0
        %v314 = vmul.f32 %v312, 0.2
        %v315 = vsel %vm313, %v312, %v314
        %v316 = vsel %vm307, 1, 0
        %317 = vset.pattern.permute.xlu0 0
        %318 = vperm.xlu0 %317, %v316
        %v319 = vpop.permute.xlu0 %318
        %vm320 = vcmp.eq.s32.totalorder %v319, 1
        %v321 = vsel %vm320, -9e+15, %v315
        %323 = vrot.lane.b32.xlu0 %v302, 124
        %v324 = vpop.permute.xlu0 %323
        %v326 = vadd.f32 %v302, %v324
        %vm327 = vcmp.gt.f32.partialorder %v326, 0.0
        %v328 = vmul.f32 %v326, 0.2
        %v329 = vsel %vm327, %v326, %v328
        %330 = vset.pattern.permute.xlu0 1
        %331 = vperm.xlu0 %330, %v316
        %v332 = vpop.permute.xlu0 %331
        %vm333 = vcmp.eq.s32.totalorder %v332, 1
        %v334 = vsel %vm333, -9e+15, %v329
        %336 = vrot.lane.b32.xlu0 %v306, 124
        %v337 = vpop.permute.xlu0 %336
        %v339 = vadd.f32 %v302, %v337
        %vm340 = vcmp.gt.f32.partialorder %v339, 0.0
        %v341 = vmul.f32 %v339, 0.2
        %v342 = vsel %vm340, %v339, %v341
        %343 = vset.pattern.permute.xlu0 2
        %344 = vperm.xlu0 %343, %v316
        %v345 = vpop.permute.xlu0 %344
        %vm346 = vcmp.eq.s32.totalorder %v345, 1
        %v347 = vsel %vm346, -9e+15, %v342
        %v348 = vmax.f32 %v321, %v334
        %v349 = vmax.f32 %v348, %v347
        %v350 = vsub.f32 %v321, %v349
        %v351 = vmul.f32 %v350, 1.442695
        %v352 = vpow.pop %v351
        %v353 = vsub.f32 %v334, %v349
        %v354 = vmul.f32 %v353, 1.442695
        %v355 = vpow.pop %v354
        %v356 = vsub.f32 %v347, %v349
        %v357 = vmul.f32 %v356, 1.442695
        %v358 = vpow.pop %v357
        %v359 = vadd.f32 %v352, %v355
        %v360 = vadd.f32 %v359, %v358
        %v361 = vrcp.pop %v360
        %v362 = vmul.f32 %v360, %v361
        %v363 = vsub.f32 2.0, %v362
        %v364 = vmul.f32 %v361, %v363
        %v365 = vld [vmem:[%s3] sm:$0xf]
        %v366 = vmul.f32 %v352, %v364
        %368 = vrot.lane.b32.xlu0 %v366, 64
        %v369 = vpop.permute.xlu0 %368
        %vm370 = vcmask 31744
        %v371 = vsel %vm370, %v369, 0
        %vm373 = vcmask 1043456
        %v375 = vsel %vm373, %v365, 0
        %377 = vmatprep.subr.mxu0 0.0
        %378 = vmatpush1.msra.mxu0 0.0
        %379 = vmatprep.subr.mxu0 0.0
        %380 = vmatpush1.msra.mxu0 0.0
        %381 = vmatprep.subr.mxu0 0.0
        %382 = vmatpush1.msra.mxu0 0.0
        %383 = vmatprep.subr.mxu0 0.0
        %384 = vmatpush1.msra.mxu0 0.0
        %385 = vmatprep.subr.mxu0 0.0
        %386 = vmatpush1.msra.mxu0 0.0
        %387 = vmatprep.subr.mxu0 0.0
        %388 = vmatpush1.msra.mxu0 0.0
        %389 = vmatprep.subr.mxu0 0.0
        %390 = vmatpush1.msra.mxu0 0.0
        %391 = vmatprep.subr.mxu0 0.0
        %392 = vmatpush1.msra.mxu0 0.0
        %393 = vmatprep.subr.mxu0 0.0
        %394 = vmatpush1.msra.mxu0 0.0
        %395 = vmatprep.subr.mxu0 0.0
        %396 = vmatpush1.msra.mxu0 0.0
        %397 = vmatprep.subr.mxu0 0.0
        %398 = vmatpush1.msra.mxu0 0.0
        %399 = vmatprep.subr.mxu0 0.0
        %400 = vmatpush1.msra.mxu0 0.0
        %401 = vmatprep.subr.mxu0 0.0
        %402 = vmatpush1.msra.mxu0 0.0
        %403 = vmatprep.subr.mxu0 0.0
        %404 = vmatpush1.msra.mxu0 0.0
        %405 = vmatprep.subr.mxu0 0.0
        %406 = vmatpush1.msra.mxu0 0.0
        %407 = vmatprep.subr.mxu0 0.0
        %408 = vmatpush1.msra.mxu0 %v375
        %409 = vmatprep.subr.mxu0 0.0
        %410 = vmatpush2.msra.mxu0 0.0
        %411 = vmatprep.subr.mxu0 0.0
        %412 = vmatpush2.msra.mxu0 0.0
        %413 = vmatprep.subr.mxu0 0.0
        %414 = vmatpush2.msra.mxu0 0.0
        %415 = vmatprep.subr.mxu0 0.0
        %416 = vmatpush2.msra.mxu0 0.0
        %417 = vmatprep.subr.mxu0 0.0
        %418 = vmatpush2.msra.mxu0 0.0
        %419 = vmatprep.subr.mxu0 0.0
        %420 = vmatpush2.msra.mxu0 0.0
        %421 = vmatprep.subr.mxu0 0.0
        %422 = vmatpush2.msra.mxu0 0.0
        %423 = vmatprep.subr.mxu0 0.0
        %424 = vmatpush2.msra.mxu0 0.0
        %425 = vmatprep.subr.mxu0 0.0
        %426 = vmatpush2.msra.mxu0 0.0
        %427 = vmatprep.subr.mxu0 0.0
        %428 = vmatpush2.msra.mxu0 0.0
        %429 = vmatprep.subr.mxu0 0.0
        %430 = vmatpush2.msra.mxu0 0.0
        %431 = vmatprep.subr.mxu0 0.0
        %432 = vmatpush2.msra.mxu0 0.0
        %433 = vmatprep.subr.mxu0 0.0
        %434 = vmatpush2.msra.mxu0 0.0
        %435 = vmatprep.subr.mxu0 0.0
        %436 = vmatpush2.msra.mxu0 0.0
        %437 = vmatprep.subr.mxu0 0.0
        %438 = vmatpush2.msra.mxu0 0.0
        %439 = vmatprep.subr.mxu0 0.0
        %440 = vmatpush2.msra.mxu0 0.0
        %441 = vmatprep.mubr.f32.mxu0 0.0
        %442 = vmatmul.mubr.f32.gmra.mxu0 %v371
        %v443 = vpop.f32.mrf.mxu0
        %v444 = vadd.f32 0.0, %v443
        %v445 = vpop.f32.mrf.mxu0
        %446 = vdwg.mxu0
        %v447 = vmul.f32 %v355, %v364
        %449 = vrot.lane.b32.xlu0 %v447, 64
        %v450 = vpop.permute.xlu0 %449
        %v451 = vsel %vm370, %v450, 0
        %453 = vmatprep.subr.mxu0 0.0
        %454 = vmatpush1.msra.mxu0 0.0
        %455 = vmatprep.subr.mxu0 0.0
        %456 = vmatpush1.msra.mxu0 0.0
        %457 = vmatprep.subr.mxu0 0.0
        %458 = vmatpush1.msra.mxu0 0.0
        %459 = vmatprep.subr.mxu0 0.0
        %460 = vmatpush1.msra.mxu0 0.0
        %461 = vmatprep.subr.mxu0 0.0
        %462 = vmatpush1.msra.mxu0 0.0
        %463 = vmatprep.subr.mxu0 0.0
        %464 = vmatpush1.msra.mxu0 0.0
        %465 = vmatprep.subr.mxu0 0.0
        %466 = vmatpush1.msra.mxu0 0.0
        %467 = vmatprep.subr.mxu0 0.0
        %468 = vmatpush1.msra.mxu0 0.0
        %469 = vmatprep.subr.mxu0 0.0
        %470 = vmatpush1.msra.mxu0 0.0
        %471 = vmatprep.subr.mxu0 0.0
        %472 = vmatpush1.msra.mxu0 0.0
        %473 = vmatprep.subr.mxu0 0.0
        %474 = vmatpush1.msra.mxu0 0.0
        %475 = vmatprep.subr.mxu0 0.0
        %476 = vmatpush1.msra.mxu0 0.0
        %477 = vmatprep.subr.mxu0 0.0
        %478 = vmatpush1.msra.mxu0 0.0
        %479 = vmatprep.subr.mxu0 0.0
        %480 = vmatpush1.msra.mxu0 0.0
        %481 = vmatprep.subr.mxu0 0.0
        %482 = vmatpush1.msra.mxu0 0.0
        %483 = vmatprep.subr.mxu0 0.0
        %484 = vmatpush1.msra.mxu0 %v375
        %485 = vmatprep.subr.mxu0 0.0
        %486 = vmatpush2.msra.mxu0 0.0
        %487 = vmatprep.subr.mxu0 0.0
        %488 = vmatpush2.msra.mxu0 0.0
        %489 = vmatprep.subr.mxu0 0.0
        %490 = vmatpush2.msra.mxu0 0.0
        %491 = vmatprep.subr.mxu0 0.0
        %492 = vmatpush2.msra.mxu0 0.0
        %493 = vmatprep.subr.mxu0 0.0
        %494 = vmatpush2.msra.mxu0 0.0
        %495 = vmatprep.subr.mxu0 0.0
        %496 = vmatpush2.msra.mxu0 0.0
        %497 = vmatprep.subr.mxu0 0.0
        %498 = vmatpush2.msra.mxu0 0.0
        %499 = vmatprep.subr.mxu0 0.0
        %500 = vmatpush2.msra.mxu0 0.0
        %501 = vmatprep.subr.mxu0 0.0
        %502 = vmatpush2.msra.mxu0 0.0
        %503 = vmatprep.subr.mxu0 0.0
        %504 = vmatpush2.msra.mxu0 0.0
        %505 = vmatprep.subr.mxu0 0.0
        %506 = vmatpush2.msra.mxu0 0.0
        %507 = vmatprep.subr.mxu0 0.0
        %508 = vmatpush2.msra.mxu0 0.0
        %509 = vmatprep.subr.mxu0 0.0
        %510 = vmatpush2.msra.mxu0 0.0
        %511 = vmatprep.subr.mxu0 0.0
        %512 = vmatpush2.msra.mxu0 0.0
        %513 = vmatprep.subr.mxu0 0.0
        %514 = vmatpush2.msra.mxu0 0.0
        %515 = vmatprep.subr.mxu0 0.0
        %516 = vmatpush2.msra.mxu0 0.0
        %517 = vmatprep.mubr.f32.mxu0 0.0
        %518 = vmatmul.mubr.f32.gmra.mxu0 %v451
        %v519 = vpop.f32.mrf.mxu0
        %v520 = vadd.f32 0.0, %v519
        %v521 = vpop.f32.mrf.mxu0
        %522 = vdwg.mxu0
        %v523 = vmul.f32 %v358, %v364
        %525 = vrot.lane.b32.xlu0 %v523, 64
        %v526 = vpop.permute.xlu0 %525
        %v527 = vsel %vm370, %v526, 0
        %529 = vmatprep.subr.mxu0 0.0
        %530 = vmatpush1.msra.mxu0 0.0
        %531 = vmatprep.subr.mxu0 0.0
        %532 = vmatpush1.msra.mxu0 0.0
        %533 = vmatprep.subr.mxu0 0.0
        %534 = vmatpush1.msra.mxu0 0.0
        %535 = vmatprep.subr.mxu0 0.0
        %536 = vmatpush1.msra.mxu0 0.0
        %537 = vmatprep.subr.mxu0 0.0
        %538 = vmatpush1.msra.mxu0 0.0
        %539 = vmatprep.subr.mxu0 0.0
        %540 = vmatpush1.msra.mxu0 0.0
        %541 = vmatprep.subr.mxu0 0.0
        %542 = vmatpush1.msra.mxu0 0.0
        %543 = vmatprep.subr.mxu0 0.0
        %544 = vmatpush1.msra.mxu0 0.0
        %545 = vmatprep.subr.mxu0 0.0
        %546 = vmatpush1.msra.mxu0 0.0
        %547 = vmatprep.subr.mxu0 0.0
        %548 = vmatpush1.msra.mxu0 0.0
        %549 = vmatprep.subr.mxu0 0.0
        %550 = vmatpush1.msra.mxu0 0.0
        %551 = vmatprep.subr.mxu0 0.0
        %552 = vmatpush1.msra.mxu0 0.0
        %553 = vmatprep.subr.mxu0 0.0
        %554 = vmatpush1.msra.mxu0 0.0
        %555 = vmatprep.subr.mxu0 0.0
        %556 = vmatpush1.msra.mxu0 0.0
        %557 = vmatprep.subr.mxu0 0.0
        %558 = vmatpush1.msra.mxu0 0.0
        %559 = vmatprep.subr.mxu0 0.0
        %560 = vmatpush1.msra.mxu0 %v375
        %561 = vmatprep.subr.mxu0 0.0
        %562 = vmatpush2.msra.mxu0 0.0
        %563 = vmatprep.subr.mxu0 0.0
        %564 = vmatpush2.msra.mxu0 0.0
        %565 = vmatprep.subr.mxu0 0.0
        %566 = vmatpush2.msra.mxu0 0.0
        %567 = vmatprep.subr.mxu0 0.0
        %568 = vmatpush2.msra.mxu0 0.0
        %569 = vmatprep.subr.mxu0 0.0
        %570 = vmatpush2.msra.mxu0 0.0
        %571 = vmatprep.subr.mxu0 0.0
        %572 = vmatpush2.msra.mxu0 0.0
        %573 = vmatprep.subr.mxu0 0.0
        %574 = vmatpush2.msra.mxu0 0.0
        %575 = vmatprep.subr.mxu0 0.0
        %576 = vmatpush2.msra.mxu0 0.0
        %577 = vmatprep.subr.mxu0 0.0
        %578 = vmatpush2.msra.mxu0 0.0
        %579 = vmatprep.subr.mxu0 0.0
        %580 = vmatpush2.msra.mxu0 0.0
        %581 = vmatprep.subr.mxu0 0.0
        %582 = vmatpush2.msra.mxu0 0.0
        %583 = vmatprep.subr.mxu0 0.0
        %584 = vmatpush2.msra.mxu0 0.0
        %585 = vmatprep.subr.mxu0 0.0
        %586 = vmatpush2.msra.mxu0 0.0
        %587 = vmatprep.subr.mxu0 0.0
        %588 = vmatpush2.msra.mxu0 0.0
        %589 = vmatprep.subr.mxu0 0.0
        %590 = vmatpush2.msra.mxu0 0.0
        %591 = vmatprep.subr.mxu0 0.0
        %592 = vmatpush2.msra.mxu0 0.0
        %593 = vmatprep.mubr.f32.mxu0 0.0
        %594 = vmatmul.mubr.f32.gmra.mxu0 %v527
        %v595 = vpop.f32.mrf.mxu0
        %v596 = vadd.f32 0.0, %v595
        %v597 = vpop.f32.mrf.mxu0
        %598 = vdwg.mxu0
        %v599 = vmul.f32 %v444, %v305
        %v600 = vmul.f32 %v520, %v302
        %v601 = vadd.f32 %v599, %v600
        %v602 = vmul.f32 %v596, %v306
        %v603 = vadd.f32 %v601, %v602
        %vm604 = vcmp.gt.f32.partialorder %v603, 0.0
        %v605 = vmin.f32 %v603, 0.0
        %v606 = vmul.f32 %v605, 1.442695
        %v607 = vpow.pop %v606
        %v608 = vsub.f32 %v607, 1.0
        %v609 = vsel %vm604, %v603, %v608
        %vm610 = vcmask 523264
        %611 = vst.msk [vmem:[%s216] sm:$0xff] %vm610, %v609
        %s612 = sand.u32 %s121, 1
        %s613 = scalar_lea.sflag [#allocation4], %s612
        %s614 = sand.u32 %s121, 1
        %s615 = smul.addr %s614, 8
        %s616 = scalar_lea.vmem [#allocation5], %s615
        // Predicated region
        $region41: #{tpu_custom_call.1} parent=35 // pred_check
          %p617 = pneg %p131
        $region42: #{tpu_custom_call.1} parent=35 // pred_check_branch
          %619 = sbr.rel (%p617) target = $region44
        $region43: #{tpu_custom_call.1} parent=35 // pred_region
          %s621 = ssub.s32 128, 128
          %622 = vsyncadd %s613, %s621
          %s623 = smul.addr %s19, 128
          %s624 = scalar_lea.hbm %s4, %s623
          %s626 = sshll.u32 %s616, 4
          %s627 = int_to_ptr.vmem [resolvable:$true] %s626
          %629 = dma.vmem_to_hbm [thread:$0]  %s627, 128, %s624, %s613
        $region44: #{tpu_custom_call.1} parent=35 // pred_fallthru
          _
      $region36: #{tpu_custom_call.1} parent=5 // pred_fallthru
        _
      %p630 = scmp.le.s32.totalorder 2, %s14
      // Predicated region
      $region45: #{tpu_custom_call.1} parent=5 // pred_check
        %p631 = pneg %p630
      $region46: #{tpu_custom_call.1} parent=5 // pred_check_branch
        %633 = sbr.rel (%p631) target = $region48
      $region47: #{tpu_custom_call.1} parent=5 // pred_region
        %s634 = ssub.s32 %s14, 2
        // Predicated region
        $region49: #{tpu_custom_call.1} parent=47 // pred_check
          %p635 = pneg %p137
        $region50: #{tpu_custom_call.1} parent=47 // pred_check_branch
          %637 = sbr.rel (%p635) target = $region52
        $region51: #{tpu_custom_call.1} parent=47 // pred_region
          %s638 = sand.u32 %s122, 1
          %s639 = scalar_lea.sflag [#allocation4], %s638
          %s640 = sand.u32 %s122, 1
          %s641 = smul.addr %s640, 8
          %s642 = scalar_lea.vmem [#allocation5], %s641
          %643 = dma.done %s639, 128
        $region52: #{tpu_custom_call.1} parent=47 // pred_fallthru
          _
      $region48: #{tpu_custom_call.1} parent=5 // pred_fallthru
        _
    $region6: #{tpu_custom_call.1} parent=1 // loop_footer
      %s18 = sadd.s32 1, %s14
    $region7: #{tpu_custom_call.1} parent=1 // loop_footer_branch
      %13 = sbr.rel target = $region3
    $region8: #{tpu_custom_call.1} parent=1 // loop_exit
      _
    %644 = vsyncpa [#allocation3], 1
    %s645 = scalar_lea.sflag [#allocation3], 1
    %646 = vsyncpa %s645, 1
    %647 = vsyncpa [#allocation4], 1
    %s648 = scalar_lea.sflag [#allocation4], 1
    %649 = vsyncpa %s648, 1

</llo_original>
